<compile_context>
chip_gen: v7x
topology: tpu7x:2x2x1
jax: 0.10.0
libtpu: 0.0.40
codegen_flags: <defaults>
</compile_context>

<pallas_src>
import functools

import jax
import jax.numpy as jnp
from jax import lax
from jax.experimental import pallas as pl
from jax.experimental.pallas import tpu as pltpu


def _round_up(x, m):
    return ((x + m - 1) // m) * m


def _vmem_budget_and_tile():
    """Per-generation VMEM limit + preferred node tile.
    v5e / v6e (128 MiB VMEM): 96 MiB limit, tile 512.
    v7x (64 MiB per TC):      48 MiB limit, tile 256."""
    cap = 64 * 1024 * 1024
    try:
        cap = int(pltpu.get_tpu_info().vmem_capacity_bytes)
    except Exception:
        pass
    if cap >= 100 * 1024 * 1024:
        return 96 * 1024 * 1024, 512
    return 48 * 1024 * 1024, 256


def _padded_and_tile(n, preferred):
    if n >= preferred:
        tile = preferred
    else:
        tile = _round_up(n, 8)
    return _round_up(n, tile), tile


# ----------------------------------------------------------------------------
# Kernel 1: row-tiled projection + attention-logit hoist.
#   per grid step i (rows [i*T, (i+1)*T)):
#     proj = x @ W                      -> [T, H*D]  (stored bf16)
#     er   = proj @ AR_blockdiag        -> [T, HP]   (dst-side logits, f32)
#     el   = AL_blockdiag @ proj^T      -> [HP, T]   (src-side logits, f32,
#                                                     pre-transposed layout)
# ----------------------------------------------------------------------------
def _proj_attn_kernel(x_ref, w_ref, al_ref, ar_ref, proj_ref, el_ref, er_ref):
    p = jnp.dot(x_ref[...], w_ref[...], preferred_element_type=jnp.float32)   # [T, H*D]
    proj_ref[...] = p.astype(proj_ref.dtype)
    er_ref[...] = jnp.dot(p, ar_ref[...], preferred_element_type=jnp.float32)  # [T, HP]
    el_ref[...] = lax.dot_general(                                             # [HP, T]
        al_ref[...], p,
        dimension_numbers=(((1,), (1,)), ((), ())),
        preferred_element_type=jnp.float32)


def linear_proj_attn(x, w, al_rows, ar_cols, *, tile_rows, vmem_limit):
    n_pad, f_in = x.shape
    hd = w.shape[1]
    hp = al_rows.shape[0]
    return pl.pallas_call(
        _proj_attn_kernel,
        out_shape=(
            jax.ShapeDtypeStruct((n_pad, hd), jnp.bfloat16),   # proj (bf16 MXU operand)
            jax.ShapeDtypeStruct((hp, n_pad), jnp.float32),    # el  (src logits, transposed)
            jax.ShapeDtypeStruct((n_pad, hp), jnp.float32),    # er  (dst logits)
        ),
        grid=(n_pad // tile_rows,),
        in_specs=[
            pl.BlockSpec((tile_rows, f_in), lambda i: (i, 0)),
            pl.BlockSpec((f_in, hd), lambda i: (0, 0)),        # W resident
            pl.BlockSpec((hp, hd), lambda i: (0, 0)),          # AL block-diag rows
            pl.BlockSpec((hd, hp), lambda i: (0, 0)),          # AR block-diag cols
        ],
        out_specs=(
            pl.BlockSpec((tile_rows, hd), lambda i: (i, 0)),
            pl.BlockSpec((hp, tile_rows), lambda i: (0, i)),
            pl.BlockSpec((tile_rows, hp), lambda i: (i, 0)),
        ),
        compiler_params=pltpu.CompilerParams(
            dimension_semantics=("parallel",),
            vmem_limit_bytes=vmem_limit,
        ),
    )(x, w, al_rows, ar_cols)


# ----------------------------------------------------------------------------
# Kernel 2: GAT attention + aggregation with online softmax.
#   grid = (dst_tiles, src_tiles); src axis is the reduction ("arbitrary").
#   per step (i, j):
#     proj_ref : [TS, H*D] bf16   source features for src tile j
#     el_ref   : [HP, TS]  f32    src-side logits for src tile j
#     er_ref   : [TD, HP]  f32    dst-side logits for dst tile i
#     adj_ref  : [TD, TS]  int8   adjacency slab (dst rows, src cols)
#   output (revisited across j, written at last j):
#     o_ref    : [TD, H*D] f32    lane-dense per-node output (== torch flatten(1))
#   scratch (persist across j): running max / denom per head, unnormalized acc.
# ----------------------------------------------------------------------------
def _gat_attn_kernel(proj_ref, el_ref, er_ref, adj_ref, o_ref,
                     m_sc, l_sc, acc_sc, *, num_heads, head_dim, apply_elu):
    j = pl.program_id(1)
    nj = pl.num_programs(1)

    @pl.when(j == 0)
    def _():
        m_sc[...] = jnp.full_like(m_sc, -1e30)
        l_sc[...] = jnp.zeros_like(l_sc)
        acc_sc[...] = jnp.zeros_like(acc_sc)

    edge = adj_ref[...] > 0                                     # [TD, TS] bool
    er_t = er_ref[...]                                          # [TD, HP] f32
    el_t = el_ref[...]                                          # [HP, TS] f32
    feat = proj_ref[...]                                        # [TS, H*D] bf16

    for h in range(num_heads):                                  # static unroll (H small)
        sl = slice(h * head_dim, (h + 1) * head_dim)
        e = er_t[:, h:h + 1] + el_t[h:h + 1, :]                 # [TD, TS]
        # fused leaky_relu(0.2) + edge mask
        e = jnp.where(edge, jnp.maximum(e, 0.2 * e), jnp.float32(-1e30))

        m_old = m_sc[:, h:h + 1]
        m_new = jnp.maximum(m_old, jnp.max(e, axis=-1, keepdims=True))
        corr = jnp.exp(m_old - m_new)                           # rescale old state
        p = jnp.exp(e - m_new)                                  # masked entries -> 0
        l_sc[:, h:h + 1] = corr * l_sc[:, h:h + 1] + jnp.sum(p, axis=-1, keepdims=True)
        # aggregate unnormalized; normalize once at the end (saves a [TD,TS] multiply)
        acc_sc[:, sl] = corr * acc_sc[:, sl] + jnp.dot(
            p.astype(feat.dtype), feat[:, sl], preferred_element_type=jnp.float32)
        m_sc[:, h:h + 1] = m_new

    @pl.when(j == nj - 1)
    def _():
        # NOTE: relies on every real dst node having >=1 in-edge (self-loops added
        # on host); rows with zero edges fall back to a uniform average (finite),
        # and padded rows are sliced off on the host.
        inv_l = pl.reciprocal(l_sc[...], approx=True)           # [TD, HP]
        for h in range(num_heads):
            sl = slice(h * head_dim, (h + 1) * head_dim)
            oh = acc_sc[:, sl] * inv_l[:, h:h + 1]
            if apply_elu:
                oh = jnp.where(oh > 0, oh, jnp.exp(jnp.minimum(oh, 0.0)) - 1.0)
            o_ref[:, sl] = oh.astype(o_ref.dtype)


def gat_attention(proj, el, er, adj_i8, *, num_heads, head_dim,
                  tile_dst, tile_src, apply_elu, vmem_limit):
    n_pad, hd = proj.shape
    hp = el.shape[0]
    kernel = functools.partial(_gat_attn_kernel, num_heads=num_heads,
                               head_dim=head_dim, apply_elu=apply_elu)
    return pl.pallas_call(
        kernel,
        out_shape=jax.ShapeDtypeStruct((n_pad, hd), jnp.float32),
        grid=(n_pad // tile_dst, n_pad // tile_src),
        in_specs=[
            pl.BlockSpec((tile_src, hd), lambda i, j: (j, 0)),        # src features
            pl.BlockSpec((hp, tile_src), lambda i, j: (0, j)),        # src logits
            pl.BlockSpec((tile_dst, hp), lambda i, j: (i, 0)),        # dst logits
            pl.BlockSpec((tile_dst, tile_src), lambda i, j: (i, j)),  # int8 adjacency slab
        ],
        out_specs=pl.BlockSpec((tile_dst, hd), lambda i, j: (i, 0)),
        scratch_shapes=[
            pltpu.VMEM((tile_dst, hp), jnp.float32),   # running max per head
            pltpu.VMEM((tile_dst, hp), jnp.float32),   # running denom per head
            pltpu.VMEM((tile_dst, hd), jnp.float32),   # unnormalized accumulator
        ],
        compiler_params=pltpu.CompilerParams(
            dimension_semantics=("parallel", "arbitrary"),
            vmem_limit_bytes=vmem_limit,
        ),
    )(proj, el, er, adj_i8)


# ----------------------------------------------------------------------------
# Host-side glue.
# ----------------------------------------------------------------------------
def _head_attn_mats(al, ar):
    """al, ar: [H, D] per-head attention vectors ->
       AL [HP, H*D] with AL[h, h*D+d] = al[h, d]   (HP = round_up(H, 8))
       AR [H*D, HP] with AR[h*D+d, h] = ar[h, d]."""
    h, d = al.shape
    hp = max(8, _round_up(h, 8))
    eye = jnp.eye(h, dtype=al.dtype)
    al_bd = (eye[:, :, None] * al[:, None, :]).reshape(h, h * d)                     # [H, H*D]
    ar_bd = (eye[:, :, None] * ar[:, None, :]).transpose(1, 2, 0).reshape(h * d, h)  # [H*D, H]
    al_pad = jnp.zeros((hp, h * d), al.dtype).at[:h].set(al_bd)
    ar_pad = jnp.zeros((h * d, hp), ar.dtype).at[:, :h].set(ar_bd)
    return al_pad, ar_pad


def gat_conv(x_pad, adj_i8, w, al, ar, *, heads, out_dim, tile, apply_elu, vmem_limit):
    """x_pad: [N_pad, Fin] -> [N_pad, heads*out_dim] (lane-dense, == torch flatten(1))."""
    al_rows, ar_cols = _head_attn_mats(al, ar)
    proj, el, er = linear_proj_attn(x_pad, w, al_rows, ar_cols,
                                    tile_rows=tile, vmem_limit=vmem_limit)
    return gat_attention(proj, el, er, adj_i8,
                         num_heads=heads, head_dim=out_dim,
                         tile_dst=tile, tile_src=tile,
                         apply_elu=apply_elu, vmem_limit=vmem_limit)


def gat_forward(params, adj, x, *, tile_preferred=None):
    n = x.shape[0]
    vmem_limit, auto_tile = _vmem_budget_and_tile()
    preferred = tile_preferred if tile_preferred is not None else auto_tile
    n_pad, tile = _padded_and_tile(n, preferred)

    x_pad = jnp.zeros((n_pad, x.shape[1]), jnp.float32).at[:n].set(x.astype(jnp.float32))
    adj_i8 = jnp.zeros((n_pad, n_pad), jnp.int8).at[:n, :n].set(
        (adj > 0.5).astype(jnp.int8))

    # layer 0: GATConv(in -> hid, heads0), activation = elu; output already flatten(1).
    h0 = gat_conv(x_pad, adj_i8,
                  params["w0"], params["al0"], params["ar0"],
                  heads=params["heads"][0], out_dim=params["hid_size"],
                  tile=tile, apply_elu=True, vmem_limit=vmem_limit)   # [N_pad, H0*hid]

    # layer 1: GATConv2(hid*H0 -> out, heads1), activation = None.
    h1 = gat_conv(h0, adj_i8,
                  params["w1"], params["al1"], params["ar1"],
                  heads=params["heads"][1], out_dim=params["out_size"],
                  tile=tile, apply_elu=False, vmem_limit=vmem_limit)  # [N_pad, H1*out]

    h1 = h1[:n]                                                       # drop padded rows
    # h.view(N*H1, out): [N, H1*out] row-major == [N, H1, out] flattened.
    return h1.reshape(n * params["heads"][1], params["out_size"])


def init_params(key, in_size, hid_size, out_size, heads):
    k = jax.random.split(key, 6)
    h0, h1 = heads

    def xavier(kk, shape):
        fan_in, fan_out = shape[0], shape[-1]
        scale = jnp.sqrt(2.0 / (fan_in + fan_out))
        return (jax.random.normal(kk, shape, jnp.float32) * scale).astype(jnp.float32)

    return {
        "heads": heads,
        "hid_size": hid_size,
        "out_size": out_size,
        "w0": xavier(k[0], (in_size, h0 * hid_size)),
        "al0": xavier(k[1], (h0, hid_size)),
        "ar0": xavier(k[2], (h0, hid_size)),
        "w1": xavier(k[3], (hid_size * h0, h1 * out_size)),
        "al1": xavier(k[4], (h1, out_size)),
        "ar1": xavier(k[5], (h1, out_size)),
    }


# ----------------------------------------------------------------------------
# Pure-JAX reference (for correctness check).
# ----------------------------------------------------------------------------
def gat_reference(params, adj, x):
    def conv(h, w, al, ar, heads, d, elu):
        n = h.shape[0]
        feat = (h @ w).reshape(n, heads, d)                      # [N, H, D]
        el = jnp.einsum("nhk,hk->nh", feat, al)                  # src term
        er = jnp.einsum("nhk,hk->nh", feat, ar)                  # dst term
        e = er[:, None, :] + el[None, :, :]                      # [dst, src, H]
        e = jnp.where(e >= 0, e, 0.2 * e)
        e = jnp.where((adj > 0.5)[:, :, None], e, -1e30)
        a = jax.nn.softmax(e, axis=1)
        out = jnp.einsum("qsh,shk->qhk", a, feat)                # [N, H, D]
        if elu:
            out = jnp.where(out > 0, out, jnp.exp(out) - 1.0)
        return out.reshape(n, heads * d)

    h = conv(x, params["w0"], params["al0"], params["ar0"],
             params["heads"][0], params["hid_size"], True)
    h = conv(h, params["w1"], params["al1"], params["ar1"],
             params["heads"][1], params["out_size"], False)
    return h.reshape(x.shape[0] * params["heads"][1], params["out_size"])


if __name__ == "__main__":
    key = jax.random.PRNGKey(0)
    k_x, k_adj, k_p = jax.random.split(key, 3)

    # Small synthetic graph / feature sizes.
    N = 16          # nodes
    IN_SIZE = 8
    HID_SIZE = 8
    OUT_SIZE = 4
    HEADS = (4, 2)

    x = jax.random.normal(k_x, (N, IN_SIZE), jnp.float32)

    # Random dense adjacency (dst, src) with self-loops so every node has an in-edge.
    adj = (jax.random.uniform(k_adj, (N, N)) < 0.3).astype(jnp.float32)
    adj = jnp.maximum(adj, jnp.eye(N, dtype=jnp.float32))

    params = init_params(k_p, IN_SIZE, HID_SIZE, OUT_SIZE, HEADS)

    out = gat_forward(params, adj, x)
    out = jax.block_until_ready(out)

    expected_shape = (N * HEADS[1], OUT_SIZE)
    assert out.shape == expected_shape, (out.shape, expected_shape)
    assert bool(jnp.all(jnp.isfinite(out)))

    ref = gat_reference(params, adj, x)
    max_err = float(jnp.max(jnp.abs(out - ref)))
    # bf16 projected features + approx reciprocal => ~1e-2 scale error vs f32 reference.
    assert max_err < 3e-2, f"max abs error vs reference: {max_err}"

    print("KERNEL_OK")
</pallas_src>

<mosaic_0001>
module attributes {stable_mosaic.version = 11 : i64} {
  func.func @_proj_attn_kernel(%arg0: i32, %arg1: memref<16x8xf32, #tpu.memory_space<vmem>>, %arg2: memref<8x32xf32, #tpu.memory_space<vmem>>, %arg3: memref<8x32xf32, #tpu.memory_space<vmem>>, %arg4: memref<32x8xf32, #tpu.memory_space<vmem>>, %arg5: memref<16x32xbf16, #tpu.memory_space<vmem>>, %arg6: memref<8x16xf32, #tpu.memory_space<vmem>>, %arg7: memref<16x8xf32, #tpu.memory_space<vmem>>) attributes {dimension_semantics = [#tpu.dimension_semantics<parallel>], iteration_bounds = array<i64: 1>, scalar_prefetch = 0 : i64, scratch_operands = 0 : i64, tpu.core_type = #tpu.core_type<tc>, window_params = [{transform_indices = @transform_0, window_bounds = array<i64: 16, 8>}, {pipeline_mode = #tpu.pipeline_mode<synchronous>, transform_indices = @transform_1, window_bounds = array<i64: 8, 32>}, {pipeline_mode = #tpu.pipeline_mode<synchronous>, transform_indices = @transform_2, window_bounds = array<i64: 8, 32>}, {pipeline_mode = #tpu.pipeline_mode<synchronous>, transform_indices = @transform_3, window_bounds = array<i64: 32, 8>}, {transform_indices = @transform_4, window_bounds = array<i64: 16, 32>}, {transform_indices = @transform_5, window_bounds = array<i64: 8, 16>}, {transform_indices = @transform_6, window_bounds = array<i64: 16, 8>}]} {
    %c0 = arith.constant 0 : index
    %c0_0 = arith.constant 0 : index
    %0 = vector.load %arg1[%c0, %c0_0] : memref<16x8xf32, #tpu.memory_space<vmem>>, vector<16x8xf32>
    %c0_1 = arith.constant 0 : index
    %c0_2 = arith.constant 0 : index
    %1 = vector.load %arg2[%c0_1, %c0_2] : memref<8x32xf32, #tpu.memory_space<vmem>>, vector<8x32xf32>
    %cst = arith.constant dense<0.000000e+00> : vector<16x32xf32>
    %2 = tpu.matmul %0, %1, %cst {dimension_numbers = #tpu.dot_dimension_numbers<[1], [0], [0], [1], [0, 0, 1, 1], [], []>} : vector<16x8xf32>, vector<8x32xf32>, vector<16x32xf32> -> vector<16x32xf32>
    %3 = arith.truncf %2 : vector<16x32xf32> to vector<16x32xbf16>
    %c0_3 = arith.constant 0 : index
    %c0_4 = arith.constant 0 : index
    %4 = vector.load %arg5[%c0_3, %c0_4] : memref<16x32xbf16, #tpu.memory_space<vmem>>, vector<16x32xbf16>
    tpu.vector_store %arg5[%c0_3, %c0_4], %3 {strides = array<i32>} : memref<16x32xbf16, #tpu.memory_space<vmem>>, vector<16x32xbf16>,
    %c0_5 = arith.constant 0 : index
    %c0_6 = arith.constant 0 : index
    %5 = vector.load %arg4[%c0_5, %c0_6] : memref<32x8xf32, #tpu.memory_space<vmem>>, vector<32x8xf32>
    %cst_7 = arith.constant dense<0.000000e+00> : vector<16x8xf32>
    %6 = tpu.matmul %2, %5, %cst_7 {dimension_numbers = #tpu.dot_dimension_numbers<[1], [0], [0], [1], [0, 0, 1, 1], [], []>} : vector<16x32xf32>, vector<32x8xf32>, vector<16x8xf32> -> vector<16x8xf32>
    %c0_8 = arith.constant 0 : index
    %c0_9 = arith.constant 0 : index
    %7 = vector.load %arg7[%c0_8, %c0_9] : memref<16x8xf32, #tpu.memory_space<vmem>>, vector<16x8xf32>
    tpu.vector_store %arg7[%c0_8, %c0_9], %6 {strides = array<i32>} : memref<16x8xf32, #tpu.memory_space<vmem>>, vector<16x8xf32>,
    %c0_10 = arith.constant 0 : index
    %c0_11 = arith.constant 0 : index
    %8 = vector.load %arg3[%c0_10, %c0_11] : memref<8x32xf32, #tpu.memory_space<vmem>>, vector<8x32xf32>
    %cst_12 = arith.constant dense<0.000000e+00> : vector<8x16xf32>
    %9 = tpu.matmul %8, %2, %cst_12 {dimension_numbers = #tpu.dot_dimension_numbers<[1], [1], [0], [0], [0, 0, 1, 0], [], []>} : vector<8x32xf32>, vector<16x32xf32>, vector<8x16xf32> -> vector<8x16xf32>
    %c0_13 = arith.constant 0 : index
    %c0_14 = arith.constant 0 : index
    %10 = vector.load %arg6[%c0_13, %c0_14] : memref<8x16xf32, #tpu.memory_space<vmem>>, vector<8x16xf32>
    tpu.vector_store %arg6[%c0_13, %c0_14], %9 {strides = array<i32>} : memref<8x16xf32, #tpu.memory_space<vmem>>, vector<8x16xf32>,
    return
  }
  func.func @transform_0(%arg0: i32) -> (i32, i32) {
    %c0_i32 = arith.constant 0 : i32
    %c0_i32_0 = arith.constant 0 : i32
    return %arg0, %c0_i32 : i32, i32
  }
  func.func @transform_1(%arg0: i32) -> (i32, i32) {
    %c0_i32 = arith.constant 0 : i32
    %c0_i32_0 = arith.constant 0 : i32
    %c0_i32_1 = arith.constant 0 : i32
    return %c0_i32, %c0_i32_0 : i32, i32
  }
  func.func @transform_2(%arg0: i32) -> (i32, i32) {
    %c0_i32 = arith.constant 0 : i32
    %c0_i32_0 = arith.constant 0 : i32
    %c0_i32_1 = arith.constant 0 : i32
    return %c0_i32, %c0_i32_0 : i32, i32
  }
  func.func @transform_3(%arg0: i32) -> (i32, i32) {
    %c0_i32 = arith.constant 0 : i32
    %c0_i32_0 = arith.constant 0 : i32
    %c0_i32_1 = arith.constant 0 : i32
    return %c0_i32, %c0_i32_0 : i32, i32
  }
  func.func @transform_4(%arg0: i32) -> (i32, i32) {
    %c0_i32 = arith.constant 0 : i32
    %c0_i32_0 = arith.constant 0 : i32
    return %arg0, %c0_i32 : i32, i32
  }
  func.func @transform_5(%arg0: i32) -> (i32, i32) {
    %c0_i32 = arith.constant 0 : i32
    %c0_i32_0 = arith.constant 0 : i32
    return %c0_i32, %arg0 : i32, i32
  }
  func.func @transform_6(%arg0: i32) -> (i32, i32) {
    %c0_i32 = arith.constant 0 : i32
    %c0_i32_0 = arith.constant 0 : i32
    return %arg0, %c0_i32 : i32, i32
  }
}

</mosaic_0001>

<llo_original>
// kernel: tpu_custom_call.1
$region0: #{tpu_custom_call.1}
  #allocation0 [shape = 'u32[]', space=smem, size = 0x4, offset = 0x4, fixed_abs, tag = 'smem constant byte address 0x4 - core index']
  #allocation1 [shape = 'u32[144,128]{1,0:T(1,128)}', space=vmem, size = 0x12000, scoped, tag = 'internal scratch']
  %s0 = inlined_call_operand.vmem [shape: f32[16,8], index: 0, kind: input, shape index: {}]
  %s1 = inlined_call_operand.vmem [shape: f32[8,32], index: 1, kind: input, shape index: {}]
  %s2 = inlined_call_operand.vmem [shape: f32[8,32], index: 2, kind: input, shape index: {}]
  %s3 = inlined_call_operand.vmem [shape: f32[32,8], index: 3, kind: input, shape index: {}]
  %s4 = inlined_call_operand.hbm [shape: bf16[16,32], index: 4, kind: output, shape index: {0}]
  %s5 = inlined_call_operand.hbm [shape: f32[8,16], index: 5, kind: output, shape index: {1}]
  %s6 = inlined_call_operand.vmem [shape: f32[16,8], index: 6, kind: output, shape index: {2}]
  %7 = xla_tuple %s4, %s5, %s6
  %s8 = sld [smem:[#allocation0]]
  $region42: #{tpu_custom_call.1} parent=0
    _
  %s10 = ssub.s32 1, %s8
  %s11 = scalar_select 0, %s10, %s8
  $region1: #{tpu_custom_call.1} parent=0
    #allocation2 [shape = 'u8[4096]{0}', space=vmem, size = 0x1000, scoped, tag = 'output window, operand 0, single buffered']
    #allocation3 [shape = 's32[1]{0}', space=sflag, size = 0x4, scoped, tag = 'scoped memory for tpu_custom_call.1']
    #allocation4 [shape = 'u8[4096]{0}', space=vmem, size = 0x1000, scoped, tag = 'output window, operand 1, single buffered']
    #allocation5 [shape = 's32[1]{0}', space=sflag, size = 0x4, scoped, tag = 'scoped memory for tpu_custom_call.1']
    %12 = vsyncpa [#allocation3], 0
    %13 = vsyncpa [#allocation5], 0
    // Predicated region
    $region2: #{tpu_custom_call.1} parent=1 // pred_check
      _
    $region3: #{tpu_custom_call.1} parent=1 // pred_check_branch
      %15 = sbr.rel (0) target = $region5
    $region4: #{tpu_custom_call.1} parent=1 // pred_region
      _
    $region5: #{tpu_custom_call.1} parent=1 // pred_fallthru
      _
    // Predicated region
    $region6: #{tpu_custom_call.1} parent=1 // pred_check
      _
    $region7: #{tpu_custom_call.1} parent=1 // pred_check_branch
      %17 = sbr.rel (0) target = $region9
    $region8: #{tpu_custom_call.1} parent=1 // pred_region
      _
    $region9: #{tpu_custom_call.1} parent=1 // pred_fallthru
      _
    // Predicated region
    $region10: #{tpu_custom_call.1} parent=1 // pred_check
      _
    $region11: #{tpu_custom_call.1} parent=1 // pred_check_branch
      %19 = sbr.rel (0) target = $region13
    $region12: #{tpu_custom_call.1} parent=1 // pred_region
      _
    $region13: #{tpu_custom_call.1} parent=1 // pred_fallthru
      _
    // Predicated region
    $region14: #{tpu_custom_call.1} parent=1 // pred_check
      _
    $region15: #{tpu_custom_call.1} parent=1 // pred_check_branch
      %21 = sbr.rel (0) target = $region17
    $region16: #{tpu_custom_call.1} parent=1 // pred_region
      _
    $region17: #{tpu_custom_call.1} parent=1 // pred_fallthru
      _
    %v22 = vld [vmem:[%s0] sm:$0xff]
    %v23 = vld [vmem:[%s0 + $0x8] sm:$0xff]
    %v24 = vld [vmem:[%s1] sm:$0xff]
    %vm25 = vcmask 64512
    %v27 = vsel %vm25, %v22, 0
    %v30 = vsel %vm25, %v23, 0
    %32 = vmatprep.subr.mxu0 0.0
    %33 = vmatpush1.msra.mxu0 %v24
    %34 = vmatprep.subr.mxu0 0.0
    %35 = vmatpush1.msra.mxu0 0.0
    %36 = vmatprep.subr.mxu0 0.0
    %37 = vmatpush1.msra.mxu0 0.0
    %38 = vmatprep.subr.mxu0 0.0
    %39 = vmatpush1.msra.mxu0 0.0
    %40 = vmatprep.subr.mxu0 0.0
    %41 = vmatpush1.msra.mxu0 0.0
    %42 = vmatprep.subr.mxu0 0.0
    %43 = vmatpush1.msra.mxu0 0.0
    %44 = vmatprep.subr.mxu0 0.0
    %45 = vmatpush1.msra.mxu0 0.0
    %46 = vmatprep.subr.mxu0 0.0
    %47 = vmatpush1.msra.mxu0 0.0
    %48 = vmatprep.subr.mxu0 0.0
    %49 = vmatpush1.msra.mxu0 0.0
    %50 = vmatprep.subr.mxu0 0.0
    %51 = vmatpush1.msra.mxu0 0.0
    %52 = vmatprep.subr.mxu0 0.0
    %53 = vmatpush1.msra.mxu0 0.0
    %54 = vmatprep.subr.mxu0 0.0
    %55 = vmatpush1.msra.mxu0 0.0
    %56 = vmatprep.subr.mxu0 0.0
    %57 = vmatpush1.msra.mxu0 0.0
    %58 = vmatprep.subr.mxu0 0.0
    %59 = vmatpush1.msra.mxu0 0.0
    %60 = vmatprep.subr.mxu0 0.0
    %61 = vmatpush1.msra.mxu0 0.0
    %62 = vmatprep.subr.mxu0 0.0
    %63 = vmatpush1.msra.mxu0 0.0
    %64 = vmatprep.subr.mxu0 0.0
    %65 = vmatpush1.msra.mxu0 0.0
    %66 = vmatprep.subr.mxu0 0.0
    %67 = vmatpush1.msra.mxu0 0.0
    %68 = vmatprep.subr.mxu0 0.0
    %69 = vmatpush1.msra.mxu0 0.0
    %70 = vmatprep.subr.mxu0 0.0
    %71 = vmatpush1.msra.mxu0 0.0
    %72 = vmatprep.subr.mxu0 0.0
    %73 = vmatpush1.msra.mxu0 0.0
    %74 = vmatprep.subr.mxu0 0.0
    %75 = vmatpush1.msra.mxu0 0.0
    %76 = vmatprep.subr.mxu0 0.0
    %77 = vmatpush1.msra.mxu0 0.0
    %78 = vmatprep.subr.mxu0 0.0
    %79 = vmatpush1.msra.mxu0 0.0
    %80 = vmatprep.subr.mxu0 0.0
    %81 = vmatpush1.msra.mxu0 0.0
    %82 = vmatprep.subr.mxu0 0.0
    %83 = vmatpush1.msra.mxu0 0.0
    %84 = vmatprep.subr.mxu0 0.0
    %85 = vmatpush1.msra.mxu0 0.0
    %86 = vmatprep.subr.mxu0 0.0
    %87 = vmatpush1.msra.mxu0 0.0
    %88 = vmatprep.subr.mxu0 0.0
    %89 = vmatpush1.msra.mxu0 0.0
    %90 = vmatprep.subr.mxu0 0.0
    %91 = vmatpush1.msra.mxu0 0.0
    %92 = vmatprep.subr.mxu0 0.0
    %93 = vmatpush1.msra.mxu0 0.0
    %94 = vmatprep.subr.mxu0 0.0
    %95 = vmatpush1.msra.mxu0 0.0
    %96 = vmatprep.mubr.f32.mxu0 0.0
    %97 = vmatmul.mubr.f32.gmra.mrb[0].mxu0 %v27
    %v98 = vpop.f32.mrb[0].mxu0
    %v99 = vadd.f32 0.0, %v98
    %v100 = vpop.f32.mrb[0].mxu0
    %101 = vmatprep.mubr.f32.mxu0 0.0
    %102 = vmatmul.mubr.f32.gmra.mrb[0].mxu0 %v30
    %v103 = vpop.f32.mrb[0].mxu0
    %v104 = vadd.f32 0.0, %v103
    %v105 = vpop.f32.mrb[0].mxu0
    %106 = vdwg.mxu0
    %v107 = vpack.c.bf16 %v104, %v99
    %v109 = vunpack.c.l.b16 %v107
    %v110 = vunpack.c.h.b16 %v107
    %v111 = vpack.c.b16 %v109, %v109
    %v112 = vpack.c.b16 %v110, %v110
    %vm115 = vcmask 257024
    %116 = vst.msk [vmem:[#allocation2] sm:$0xf] %vm115, %v111
    %117 = vst.msk [vmem:[#allocation2 + $0x4] sm:$0xf] %vm115, %v112
    %v118 = vld [vmem:[%s3] sm:$0xff]
    %v119 = vld [vmem:[%s3 + $0x8] sm:$0xff]
    %v120 = vld [vmem:[%s3 + $0x10] sm:$0xff]
    %v121 = vld [vmem:[%s3 + $0x18] sm:$0xff]
    %vm122 = vcmask 261120
    %v124 = vsel %vm122, %v99, 0
    %v127 = vsel %vm122, %v104, 0
    %129 = vmatprep.subr.mxu0 0.0
    %130 = vmatpush1.msra.mxu0 %v118
    %131 = vmatprep.subr.mxu0 0.0
    %132 = vmatpush1.msra.mxu0 %v119
    %133 = vmatprep.subr.mxu0 0.0
    %134 = vmatpush1.msra.mxu0 %v120
    %135 = vmatprep.subr.mxu0 0.0
    %136 = vmatpush1.msra.mxu0 %v121
    %137 = vmatprep.subr.mxu0 0.0
    %138 = vmatpush1.msra.mxu0 0.0
    %139 = vmatprep.subr.mxu0 0.0
    %140 = vmatpush1.msra.mxu0 0.0
    %141 = vmatprep.subr.mxu0 0.0
    %142 = vmatpush1.msra.mxu0 0.0
    %143 = vmatprep.subr.mxu0 0.0
    %144 = vmatpush1.msra.mxu0 0.0
    %145 = vmatprep.subr.mxu0 0.0
    %146 = vmatpush1.msra.mxu0 0.0
    %147 = vmatprep.subr.mxu0 0.0
    %148 = vmatpush1.msra.mxu0 0.0
    %149 = vmatprep.subr.mxu0 0.0
    %150 = vmatpush1.msra.mxu0 0.0
    %151 = vmatprep.subr.mxu0 0.0
    %152 = vmatpush1.msra.mxu0 0.0
    %153 = vmatprep.subr.mxu0 0.0
    %154 = vmatpush1.msra.mxu0 0.0
    %155 = vmatprep.subr.mxu0 0.0
    %156 = vmatpush1.msra.mxu0 0.0
    %157 = vmatprep.subr.mxu0 0.0
    %158 = vmatpush1.msra.mxu0 0.0
    %159 = vmatprep.subr.mxu0 0.0
    %160 = vmatpush1.msra.mxu0 0.0
    %161 = vmatprep.subr.mxu0 0.0
    %162 = vmatpush1.msra.mxu0 0.0
    %163 = vmatprep.subr.mxu0 0.0
    %164 = vmatpush1.msra.mxu0 0.0
    %165 = vmatprep.subr.mxu0 0.0
    %166 = vmatpush1.msra.mxu0 0.0
    %167 = vmatprep.subr.mxu0 0.0
    %168 = vmatpush1.msra.mxu0 0.0
    %169 = vmatprep.subr.mxu0 0.0
    %170 = vmatpush1.msra.mxu0 0.0
    %171 = vmatprep.subr.mxu0 0.0
    %172 = vmatpush1.msra.mxu0 0.0
    %173 = vmatprep.subr.mxu0 0.0
    %174 = vmatpush1.msra.mxu0 0.0
    %175 = vmatprep.subr.mxu0 0.0
    %176 = vmatpush1.msra.mxu0 0.0
    %177 = vmatprep.subr.mxu0 0.0
    %178 = vmatpush1.msra.mxu0 0.0
    %179 = vmatprep.subr.mxu0 0.0
    %180 = vmatpush1.msra.mxu0 0.0
    %181 = vmatprep.subr.mxu0 0.0
    %182 = vmatpush1.msra.mxu0 0.0
    %183 = vmatprep.subr.mxu0 0.0
    %184 = vmatpush1.msra.mxu0 0.0
    %185 = vmatprep.subr.mxu0 0.0
    %186 = vmatpush1.msra.mxu0 0.0
    %187 = vmatprep.subr.mxu0 0.0
    %188 = vmatpush1.msra.mxu0 0.0
    %189 = vmatprep.subr.mxu0 0.0
    %190 = vmatpush1.msra.mxu0 0.0
    %191 = vmatprep.subr.mxu0 0.0
    %192 = vmatpush1.msra.mxu0 0.0
    %193 = vmatprep.mubr.f32.mxu0 0.0
    %194 = vmatmul.mubr.f32.gmra.mrb[0].mxu0 %v124
    %v195 = vpop.f32.mrb[0].mxu0
    %v196 = vadd.f32 0.0, %v195
    %v197 = vpop.f32.mrb[0].mxu0
    %198 = vmatprep.mubr.f32.mxu0 0.0
    %199 = vmatmul.mubr.f32.gmra.mrb[0].mxu0 %v127
    %v200 = vpop.f32.mrb[0].mxu0
    %v201 = vadd.f32 0.0, %v200
    %v202 = vpop.f32.mrb[0].mxu0
    %203 = vdwg.mxu0
    %204 = vst.msk [vmem:[%s6] sm:$0xff] %vm25, %v196
    %205 = vst.msk [vmem:[%s6 + $0x8] sm:$0xff] %vm25, %v201
    %v206 = vld [vmem:[%s2] sm:$0xff]
    %v208 = vsel %vm122, %v206, 0
    %210 = vmatprep.subr.mxu0 0.0
    %211 = vmatpush1.xpose.msra.mxu0 %v124
    %212 = vmatprep.subr.mxu0 0.0
    %213 = vmatpush1.xpose.msra.mxu0 %v127
    %214 = vmatprep.subr.mxu0 0.0
    %215 = vmatpush1.xpose.msra.mxu0 0.0
    %216 = vmatprep.subr.mxu0 0.0
    %217 = vmatpush1.xpose.msra.mxu0 0.0
    %218 = vmatprep.subr.mxu0 0.0
    %219 = vmatpush1.xpose.msra.mxu0 0.0
    %220 = vmatprep.subr.mxu0 0.0
    %221 = vmatpush1.xpose.msra.mxu0 0.0
    %222 = vmatprep.subr.mxu0 0.0
    %223 = vmatpush1.xpose.msra.mxu0 0.0
    %224 = vmatprep.subr.mxu0 0.0
    %225 = vmatpush1.xpose.msra.mxu0 0.0
    %226 = vmatprep.subr.mxu0 0.0
    %227 = vmatpush1.xpose.msra.mxu0 0.0
    %228 = vmatprep.subr.mxu0 0.0
    %229 = vmatpush1.xpose.msra.mxu0 0.0
    %230 = vmatprep.subr.mxu0 0.0
    %231 = vmatpush1.xpose.msra.mxu0 0.0
    %232 = vmatprep.subr.mxu0 0.0
    %233 = vmatpush1.xpose.msra.mxu0 0.0
    %234 = vmatprep.subr.mxu0 0.0
    %235 = vmatpush1.xpose.msra.mxu0 0.0
    %236 = vmatprep.subr.mxu0 0.0
    %237 = vmatpush1.xpose.msra.mxu0 0.0
    %238 = vmatprep.subr.mxu0 0.0
    %239 = vmatpush1.xpose.msra.mxu0 0.0
    %240 = vmatprep.subr.mxu0 0.0
    %241 = vmatpush1.xpose.msra.mxu0 0.0
    %242 = vmatprep.subr.mxu0 0.0
    %243 = vmatpush1.xpose.msra.mxu0 0.0
    %244 = vmatprep.subr.mxu0 0.0
    %245 = vmatpush1.xpose.msra.mxu0 0.0
    %246 = vmatprep.subr.mxu0 0.0
    %247 = vmatpush1.xpose.msra.mxu0 0.0
    %248 = vmatprep.subr.mxu0 0.0
    %249 = vmatpush1.xpose.msra.mxu0 0.0
    %250 = vmatprep.subr.mxu0 0.0
    %251 = vmatpush1.xpose.msra.mxu0 0.0
    %252 = vmatprep.subr.mxu0 0.0
    %253 = vmatpush1.xpose.msra.mxu0 0.0
    %254 = vmatprep.subr.mxu0 0.0
    %255 = vmatpush1.xpose.msra.mxu0 0.0
    %256 = vmatprep.subr.mxu0 0.0
    %257 = vmatpush1.xpose.msra.mxu0 0.0
    %258 = vmatprep.subr.mxu0 0.0
    %259 = vmatpush1.xpose.msra.mxu0 0.0
    %260 = vmatprep.subr.mxu0 0.0
    %261 = vmatpush1.xpose.msra.mxu0 0.0
    %262 = vmatprep.subr.mxu0 0.0
    %263 = vmatpush1.xpose.msra.mxu0 0.0
    %264 = vmatprep.subr.mxu0 0.0
    %265 = vmatpush1.xpose.msra.mxu0 0.0
    %266 = vmatprep.subr.mxu0 0.0
    %267 = vmatpush1.xpose.msra.mxu0 0.0
    %268 = vmatprep.subr.mxu0 0.0
    %269 = vmatpush1.xpose.msra.mxu0 0.0
    %270 = vmatprep.subr.mxu0 0.0
    %271 = vmatpush1.xpose.msra.mxu0 0.0
    %272 = vmatprep.subr.mxu0 0.0
    %273 = vmatpush1.xpose.msra.mxu0 0.0
    %274 = vmatprep.mubr.f32.mxu0 0.0
    %275 = vmatmul.mubr.f32.gmra.mrb[0].mxu0 %v208
    %v276 = vpop.f32.mrb[0].mxu0
    %v277 = vadd.f32 0.0, %v276
    %v278 = vpop.f32.mrb[0].mxu0
    %279 = vdwg.mxu0
    %vm280 = vcmask 130048
    %281 = vst.msk [vmem:[#allocation4] sm:$0xff] %vm280, %v277
    // Predicated region
    $region18: #{tpu_custom_call.1} parent=1 // pred_check
      _
    $region19: #{tpu_custom_call.1} parent=1 // pred_check_branch
      %283 = sbr.rel (0) target = $region21
    $region20: #{tpu_custom_call.1} parent=1 // pred_region
      %s285 = ssub.s32 128, 128
      %286 = vsyncadd [#allocation3], %s285
      %s287 = sshll.u32 [#allocation2], 4
      %s288 = int_to_ptr.vmem [resolvable:$true] %s287
      %293 = dma.vmem_to_hbm [thread:$0]  %s288, 128, %s4, [#allocation3], 64, 64, 4
    $region21: #{tpu_custom_call.1} parent=1 // pred_fallthru
      _
    // Predicated region
    $region22: #{tpu_custom_call.1} parent=1 // pred_check
      _
    $region23: #{tpu_custom_call.1} parent=1 // pred_check_branch
      %295 = sbr.rel (0) target = $region25
    $region24: #{tpu_custom_call.1} parent=1 // pred_region
      %s297 = ssub.s32 128, 128
      %298 = vsyncadd [#allocation5], %s297
      %s300 = sshll.u32 [#allocation4], 4
      %s301 = int_to_ptr.vmem [resolvable:$true] %s300
      %303 = dma.vmem_to_hbm [thread:$0]  %s301, 128, %s5, [#allocation5]
    $region25: #{tpu_custom_call.1} parent=1 // pred_fallthru
      _
    // Predicated region
    $region26: #{tpu_custom_call.1} parent=1 // pred_check
      _
    $region27: #{tpu_custom_call.1} parent=1 // pred_check_branch
      %305 = sbr.rel (0) target = $region29
    $region28: #{tpu_custom_call.1} parent=1 // pred_region
      _
    $region29: #{tpu_custom_call.1} parent=1 // pred_fallthru
      _
    // Predicated region
    $region30: #{tpu_custom_call.1} parent=1 // pred_check
      _
    $region31: #{tpu_custom_call.1} parent=1 // pred_check_branch
      %307 = sbr.rel (0) target = $region33
    $region32: #{tpu_custom_call.1} parent=1 // pred_region
      %308 = dma.done [#allocation3], 128
    $region33: #{tpu_custom_call.1} parent=1 // pred_fallthru
      _
    // Predicated region
    $region34: #{tpu_custom_call.1} parent=1 // pred_check
      _
    $region35: #{tpu_custom_call.1} parent=1 // pred_check_branch
      %310 = sbr.rel (0) target = $region37
    $region36: #{tpu_custom_call.1} parent=1 // pred_region
      %311 = dma.done [#allocation5], 128
    $region37: #{tpu_custom_call.1} parent=1 // pred_fallthru
      _
    // Predicated region
    $region38: #{tpu_custom_call.1} parent=1 // pred_check
      _
    $region39: #{tpu_custom_call.1} parent=1 // pred_check_branch
      %313 = sbr.rel (0) target = $region41
    $region40: #{tpu_custom_call.1} parent=1 // pred_region
      _
    $region41: #{tpu_custom_call.1} parent=1 // pred_fallthru
      _
    %314 = vsyncpa [#allocation3], 1
    %315 = vsyncpa [#allocation5], 1

</llo_original>
